<compile_context>
chip_gen: v7x
topology: tpu7x:2x2x1
jax: 0.10.0
libtpu: 0.0.40
codegen_flags: <defaults>
</compile_context>

<pallas_src>
import functools

import jax
import jax.numpy as jnp
from jax.experimental import pallas as pl
from jax.experimental.pallas import tpu as pltpu


def _conv3x3_relu_kernel(x_ref, w_ref, b_ref, o_ref, xpad_ref, im_ref,
                         *, width, interior):
    """3x3 same-padding conv + bias + ReLU for the whole (tiny) batch.

    x_ref:    (B, Ci, H*W)             NCHW input, spatial dims flattened (lane-dense)
    w_ref:    (Co, 9*Ci)               folded conv weights, row order (kh, kw, ci)
    b_ref:    (Co, 1)                  bias (broadcasts over lanes)
    o_ref:    (B, Co, H*W)             lane-dense output (NCHW after a metadata reshape)
    xpad_ref: (B, Ci, PAD_LEN)         VMEM scratch: flat zero-halo buffer
    im_ref:   (B, 9*Ci, H*W)           VMEM scratch: im2col activation matrix
    """
    B, Ci, HW = x_ref.shape
    Co = o_ref.shape[1]
    W = width

    # ---- in-kernel 'same' padding: zero the halo buffer, copy the interior.
    # Interior starts at lane offset `interior` (=128) -> aligned, unmasked stores.
    xpad_ref[...] = jnp.zeros_like(xpad_ref)
    xpad_ref[:, :, interior:interior + HW] = x_ref[...]

    # ---- column-validity masks for the horizontally shifted taps (hoisted,
    # computed once; row over/underflow is handled by the zero halo itself).
    col = jax.lax.broadcasted_iota(jnp.int32, (1, HW), 1) % W
    valid_left = (col >= 1)[None]            # tap dw == -1
    valid_right = (col < (W - 1))[None]      # tap dw == +1

    # ---- im2col: the 9 shifted taps stacked along the contraction axis.
    # Each tap is a contiguous window of the flat halo buffer (+ a column mask
    # for the horizontal shifts); this feeds ONE K=9*Ci matmul instead of nine
    # K=Ci matmuls.
    for dh in (-1, 0, 1):
        for dw in (-1, 0, 1):
            t = (dh + 1) * 3 + (dw + 1)
            start = interior + dh * W + dw
            win = xpad_ref[:, :, start:start + HW]          # (B, Ci, HW)
            if dw == -1:
                win = jnp.where(valid_left, win, 0.0)
            elif dw == 1:
                win = jnp.where(valid_right, win, 0.0)
            im_ref[:, t * Ci:(t + 1) * Ci, :] = win

    # ---- single lane-dense contraction per batch element:
    #      (Co, 9*Ci) @ (9*Ci, H*W) -> (Co, H*W); bias + ReLU in f32.
    w_mat = w_ref[...]                                      # (Co, 9*Ci)
    bias = b_ref[...]                                       # (Co, 1)
    for b in range(B):                                      # B is tiny & static
        y = jnp.dot(w_mat, im_ref[b], preferred_element_type=jnp.float32)
        o_ref[b] = jnp.maximum(y + bias, 0.0).astype(o_ref.dtype)


def _conv3x3_relu_nchw(x_nchw, w_mat, bias_col):
    """x_nchw: (B, Ci, H, W) -> (B, Co, H, W). NCHW in, NCHW out, no transposes."""
    B, Ci, H, W = x_nchw.shape
    Co = w_mat.shape[0]
    HW = H * W

    interior = 128                       # lane-aligned interior start in the halo buffer
    assert W + 1 <= interior, "left halo must fit before the interior"
    pad_len = interior + HW + W + 1      # right halo covers the (dh,dw)=(+1,+1) tap

    # Row-major flatten of the spatial dims: metadata-only, no HBM shuffle.
    x_flat = x_nchw.reshape(B, Ci, HW)

    kernel = functools.partial(_conv3x3_relu_kernel, width=W, interior=interior)

    y_flat = pl.pallas_call(
        kernel,
        out_shape=jax.ShapeDtypeStruct((B, Co, HW), x_nchw.dtype),
        # Single grid step: whole problem (~30 KiB) lives in VMEM at once.
        in_specs=[
            pl.BlockSpec(memory_space=pltpu.MemorySpace.VMEM),   # x_flat
            pl.BlockSpec(memory_space=pltpu.MemorySpace.VMEM),   # w_mat
            pl.BlockSpec(memory_space=pltpu.MemorySpace.VMEM),   # bias
        ],
        out_specs=pl.BlockSpec(memory_space=pltpu.MemorySpace.VMEM),
        scratch_shapes=[
            pltpu.VMEM((B, Ci, pad_len), jnp.float32),           # zero-halo input
            pltpu.VMEM((B, 9 * Ci, HW), jnp.float32),            # im2col activations
        ],
    )(x_flat, w_mat, bias_col)

    # Back to NCHW: metadata-only reshape (no transpose kernel).
    return y_flat.reshape(B, Co, H, W)


class DummyModuleJax:
    """JAX/Pallas equivalent of DummyModule: forwards everything to the wrapped
    inner model."""
    # TODO(synk): load_my_state_dict is host-side parameter copying (no device
    # compute), so it has no Pallas equivalent and is intentionally omitted.

    def __init__(self, model):
        self.module = model

    def __call__(self, *xs, **kwargs):
        return self.module(*xs, **kwargs)


class InnerConvReluJax:
    """Representative inner model: Conv2d(Ci, Co, 3, padding=1) + ReLU.
    Public interface is NCHW (PyTorch convention)."""

    def __init__(self, ci, co, key):
        k_w, k_b = jax.random.split(key)
        fan_in = ci * 9
        bound = 1.0 / (fan_in ** 0.5)
        # PyTorch Conv2d weight layout (OIHW), kept for the reference check.
        self.w_oihw = jax.random.uniform(k_w, (co, ci, 3, 3), jnp.float32,
                                         -bound, bound)
        self.bias = jax.random.uniform(k_b, (co,), jnp.float32, -bound, bound)
        # One-time parameter prep: fold the 3x3 taps into a (Co, 9*Ci) matrix
        # with row order (kh, kw, ci), matching the kernel's im2col ordering.
        self.w_mat = jnp.transpose(self.w_oihw, (0, 2, 3, 1)).reshape(co, 9 * ci)
        self.bias_col = self.bias.reshape(co, 1)

    def __call__(self, x_nchw):
        return _conv3x3_relu_nchw(x_nchw, self.w_mat, self.bias_col)


if __name__ == "__main__":
    key = jax.random.PRNGKey(0)
    k_param, k_x = jax.random.split(key)

    B, Ci, H, W = 2, 4, 16, 16
    Co = 8

    inner = InnerConvReluJax(Ci, Co, k_param)
    net = DummyModuleJax(inner)           # DummyModule wraps the inner model

    x = jax.random.normal(k_x, (B, Ci, H, W), jnp.float32)       # NCHW input

    fwd = jax.jit(lambda v: net(v))       # forward(*xs) -> module(*xs)
    out = jax.block_until_ready(fwd(x))

    assert out.shape == (B, Co, H, W), out.shape

    # Sanity check against a pure-JAX reference conv.
    ref = jax.lax.conv_general_dilated(
        x, inner.w_oihw, window_strides=(1, 1), padding="SAME",
        dimension_numbers=("NCHW", "OIHW", "NCHW"))
    ref = jnp.maximum(ref + inner.bias.reshape(1, Co, 1, 1), 0.0)
    assert jnp.allclose(out, ref, atol=1e-4, rtol=1e-4), \
        float(jnp.max(jnp.abs(out - ref)))

    print("KERNEL_OK")
</pallas_src>

<mosaic_0001>
module attributes {stable_mosaic.version = 11 : i64} {
  func.func @_conv3x3_relu_kernel(%arg0: memref<2x4x256xf32, #tpu.memory_space<vmem>>, %arg1: memref<8x36xf32, #tpu.memory_space<vmem>>, %arg2: memref<8x1xf32, #tpu.memory_space<vmem>>, %arg3: memref<2x8x256xf32, #tpu.memory_space<vmem>>, %arg4: memref<2x4x401xf32, #tpu.memory_space<vmem>>, %arg5: memref<2x36x256xf32, #tpu.memory_space<vmem>>) attributes {dimension_semantics = [], scalar_prefetch = 0 : i64, scratch_operands = 2 : i64, tpu.core_type = #tpu.core_type<tc>} {
    %cst = arith.constant 0.000000e+00 : f32
    %0 = vector.broadcast %cst : f32 to vector<2x4x401xf32>
    %c0 = arith.constant 0 : index
    %c0_0 = arith.constant 0 : index
    %c0_1 = arith.constant 0 : index
    %1 = vector.load %arg4[%c0, %c0_0, %c0_1] : memref<2x4x401xf32, #tpu.memory_space<vmem>>, vector<2x4x401xf32>
    tpu.vector_store %arg4[%c0, %c0_0, %c0_1], %0 {strides = array<i32>} : memref<2x4x401xf32, #tpu.memory_space<vmem>>, vector<2x4x401xf32>,
    %c0_2 = arith.constant 0 : index
    %c0_3 = arith.constant 0 : index
    %c0_4 = arith.constant 0 : index
    %2 = vector.load %arg0[%c0_2, %c0_3, %c0_4] : memref<2x4x256xf32, #tpu.memory_space<vmem>>, vector<2x4x256xf32>
    %c0_5 = arith.constant 0 : index
    %c0_6 = arith.constant 0 : index
    %c128 = arith.constant 128 : index
    %3 = vector.load %arg4[%c0_5, %c0_6, %c128] : memref<2x4x401xf32, #tpu.memory_space<vmem>>, vector<2x4x256xf32>
    tpu.vector_store %arg4[%c0_5, %c0_6, %c128], %2 {strides = array<i32>} : memref<2x4x401xf32, #tpu.memory_space<vmem>>, vector<2x4x256xf32>,
    %4 = tpu.iota {dimensions = array<i32: 1>} : vector<1x256xi32>
    %c16_i32 = arith.constant 16 : i32
    %c0_i32 = arith.constant 0 : i32
    %5 = arith.cmpi eq, %c16_i32, %c0_i32 : i32
    %c1_i32 = arith.constant 1 : i32
    %6 = arith.select %5, %c1_i32, %c16_i32 : i32
    %7 = vector.broadcast %6 : i32 to vector<1x256xi32>
    %8 = arith.remsi %4, %7 : vector<1x256xi32>
    %c0_i32_7 = arith.constant 0 : i32
    %9 = vector.broadcast %c0_i32_7 : i32 to vector<1x256xi32>
    %10 = arith.cmpi ne, %8, %9 : vector<1x256xi32>
    %c0_i32_8 = arith.constant 0 : i32
    %11 = vector.broadcast %c0_i32_8 : i32 to vector<1x256xi32>
    %12 = arith.cmpi slt, %8, %11 : vector<1x256xi32>
    %c0_i32_9 = arith.constant 0 : i32
    %13 = arith.cmpi slt, %6, %c0_i32_9 : i32
    %14 = vector.broadcast %13 : i1 to vector<1x256xi1>
    %15 = vector.broadcast %14 : vector<1x256xi1> to vector<1x256xi1>
    %16 = arith.xori %12, %15 : vector<1x256xi1>
    %17 = arith.andi %16, %10 : vector<1x256xi1>
    %18 = vector.broadcast %6 : i32 to vector<1x256xi32>
    %19 = arith.addi %8, %18 : vector<1x256xi32>
    %20 = arith.select %17, %19, %8 : vector<1x256xi1>, vector<1x256xi32>
    %c1_i32_10 = arith.constant 1 : i32
    %21 = vector.broadcast %c1_i32_10 : i32 to vector<1x256xi32>
    %22 = arith.cmpi sge, %20, %21 : vector<1x256xi32>
    %23 = vector.shape_cast %22 : vector<1x256xi1> to vector<1x1x256xi1>
    %c15_i32 = arith.constant 15 : i32
    %24 = vector.broadcast %c15_i32 : i32 to vector<1x256xi32>
    %25 = arith.cmpi slt, %20, %24 : vector<1x256xi32>
    %26 = vector.shape_cast %25 : vector<1x256xi1> to vector<1x1x256xi1>
    %c0_11 = arith.constant 0 : index
    %c0_12 = arith.constant 0 : index
    %c111 = arith.constant 111 : index
    %27 = vector.load %arg4[%c0_11, %c0_12, %c111] : memref<2x4x401xf32, #tpu.memory_space<vmem>>, vector<2x4x256xf32>
    %cst_13 = arith.constant 0.000000e+00 : f32
    %28 = vector.shape_cast %23 : vector<1x1x256xi1> to vector<1x1x256xi1>
    %29 = vector.broadcast %28 : vector<1x1x256xi1> to vector<2x4x256xi1>
    %30 = vector.broadcast %cst_13 : f32 to vector<2x4x256xf32>
    %31 = arith.select %29, %27, %30 : vector<2x4x256xi1>, vector<2x4x256xf32>
    %c0_14 = arith.constant 0 : index
    %c0_15 = arith.constant 0 : index
    %c0_16 = arith.constant 0 : index
    %32 = vector.load %arg5[%c0_14, %c0_15, %c0_16] : memref<2x36x256xf32, #tpu.memory_space<vmem>>, vector<2x4x256xf32>
    tpu.vector_store %arg5[%c0_14, %c0_15, %c0_16], %31 {strides = array<i32>} : memref<2x36x256xf32, #tpu.memory_space<vmem>>, vector<2x4x256xf32>,
    %c0_17 = arith.constant 0 : index
    %c0_18 = arith.constant 0 : index
    %c112 = arith.constant 112 : index
    %33 = vector.load %arg4[%c0_17, %c0_18, %c112] : memref<2x4x401xf32, #tpu.memory_space<vmem>>, vector<2x4x256xf32>
    %c0_19 = arith.constant 0 : index
    %c4 = arith.constant 4 : index
    %c0_20 = arith.constant 0 : index
    %34 = vector.load %arg5[%c0_19, %c4, %c0_20] : memref<2x36x256xf32, #tpu.memory_space<vmem>>, vector<2x4x256xf32>
    tpu.vector_store %arg5[%c0_19, %c4, %c0_20], %33 {strides = array<i32>} : memref<2x36x256xf32, #tpu.memory_space<vmem>>, vector<2x4x256xf32>,
    %c0_21 = arith.constant 0 : index
    %c0_22 = arith.constant 0 : index
    %c113 = arith.constant 113 : index
    %35 = vector.load %arg4[%c0_21, %c0_22, %c113] : memref<2x4x401xf32, #tpu.memory_space<vmem>>, vector<2x4x256xf32>
    %cst_23 = arith.constant 0.000000e+00 : f32
    %36 = vector.shape_cast %26 : vector<1x1x256xi1> to vector<1x1x256xi1>
    %37 = vector.broadcast %36 : vector<1x1x256xi1> to vector<2x4x256xi1>
    %38 = vector.broadcast %cst_23 : f32 to vector<2x4x256xf32>
    %39 = arith.select %37, %35, %38 : vector<2x4x256xi1>, vector<2x4x256xf32>
    %c0_24 = arith.constant 0 : index
    %c8 = arith.constant 8 : index
    %c0_25 = arith.constant 0 : index
    %40 = vector.load %arg5[%c0_24, %c8, %c0_25] : memref<2x36x256xf32, #tpu.memory_space<vmem>>, vector<2x4x256xf32>
    tpu.vector_store %arg5[%c0_24, %c8, %c0_25], %39 {strides = array<i32>} : memref<2x36x256xf32, #tpu.memory_space<vmem>>, vector<2x4x256xf32>,
    %c0_26 = arith.constant 0 : index
    %c0_27 = arith.constant 0 : index
    %c127 = arith.constant 127 : index
    %41 = vector.load %arg4[%c0_26, %c0_27, %c127] : memref<2x4x401xf32, #tpu.memory_space<vmem>>, vector<2x4x256xf32>
    %cst_28 = arith.constant 0.000000e+00 : f32
    %42 = vector.shape_cast %23 : vector<1x1x256xi1> to vector<1x1x256xi1>
    %43 = vector.broadcast %42 : vector<1x1x256xi1> to vector<2x4x256xi1>
    %44 = vector.broadcast %cst_28 : f32 to vector<2x4x256xf32>
    %45 = arith.select %43, %41, %44 : vector<2x4x256xi1>, vector<2x4x256xf32>
    %c0_29 = arith.constant 0 : index
    %c12 = arith.constant 12 : index
    %c0_30 = arith.constant 0 : index
    %46 = vector.load %arg5[%c0_29, %c12, %c0_30] : memref<2x36x256xf32, #tpu.memory_space<vmem>>, vector<2x4x256xf32>
    tpu.vector_store %arg5[%c0_29, %c12, %c0_30], %45 {strides = array<i32>} : memref<2x36x256xf32, #tpu.memory_space<vmem>>, vector<2x4x256xf32>,
    %c0_31 = arith.constant 0 : index
    %c0_32 = arith.constant 0 : index
    %c128_33 = arith.constant 128 : index
    %47 = vector.load %arg4[%c0_31, %c0_32, %c128_33] : memref<2x4x401xf32, #tpu.memory_space<vmem>>, vector<2x4x256xf32>
    %c0_34 = arith.constant 0 : index
    %c16 = arith.constant 16 : index
    %c0_35 = arith.constant 0 : index
    %48 = vector.load %arg5[%c0_34, %c16, %c0_35] : memref<2x36x256xf32, #tpu.memory_space<vmem>>, vector<2x4x256xf32>
    tpu.vector_store %arg5[%c0_34, %c16, %c0_35], %47 {strides = array<i32>} : memref<2x36x256xf32, #tpu.memory_space<vmem>>, vector<2x4x256xf32>,
    %c0_36 = arith.constant 0 : index
    %c0_37 = arith.constant 0 : index
    %c129 = arith.constant 129 : index
    %49 = vector.load %arg4[%c0_36, %c0_37, %c129] : memref<2x4x401xf32, #tpu.memory_space<vmem>>, vector<2x4x256xf32>
    %cst_38 = arith.constant 0.000000e+00 : f32
    %50 = vector.shape_cast %26 : vector<1x1x256xi1> to vector<1x1x256xi1>
    %51 = vector.broadcast %50 : vector<1x1x256xi1> to vector<2x4x256xi1>
    %52 = vector.broadcast %cst_38 : f32 to vector<2x4x256xf32>
    %53 = arith.select %51, %49, %52 : vector<2x4x256xi1>, vector<2x4x256xf32>
    %c0_39 = arith.constant 0 : index
    %c20 = arith.constant 20 : index
    %c0_40 = arith.constant 0 : index
    %54 = vector.load %arg5[%c0_39, %c20, %c0_40] : memref<2x36x256xf32, #tpu.memory_space<vmem>>, vector<2x4x256xf32>
    tpu.vector_store %arg5[%c0_39, %c20, %c0_40], %53 {strides = array<i32>} : memref<2x36x256xf32, #tpu.memory_space<vmem>>, vector<2x4x256xf32>,
    %c0_41 = arith.constant 0 : index
    %c0_42 = arith.constant 0 : index
    %c143 = arith.constant 143 : index
    %55 = vector.load %arg4[%c0_41, %c0_42, %c143] : memref<2x4x401xf32, #tpu.memory_space<vmem>>, vector<2x4x256xf32>
    %cst_43 = arith.constant 0.000000e+00 : f32
    %56 = vector.shape_cast %23 : vector<1x1x256xi1> to vector<1x1x256xi1>
    %57 = vector.broadcast %56 : vector<1x1x256xi1> to vector<2x4x256xi1>
    %58 = vector.broadcast %cst_43 : f32 to vector<2x4x256xf32>
    %59 = arith.select %57, %55, %58 : vector<2x4x256xi1>, vector<2x4x256xf32>
    %c0_44 = arith.constant 0 : index
    %c24 = arith.constant 24 : index
    %c0_45 = arith.constant 0 : index
    %60 = vector.load %arg5[%c0_44, %c24, %c0_45] : memref<2x36x256xf32, #tpu.memory_space<vmem>>, vector<2x4x256xf32>
    tpu.vector_store %arg5[%c0_44, %c24, %c0_45], %59 {strides = array<i32>} : memref<2x36x256xf32, #tpu.memory_space<vmem>>, vector<2x4x256xf32>,
    %c0_46 = arith.constant 0 : index
    %c0_47 = arith.constant 0 : index
    %c144 = arith.constant 144 : index
    %61 = vector.load %arg4[%c0_46, %c0_47, %c144] : memref<2x4x401xf32, #tpu.memory_space<vmem>>, vector<2x4x256xf32>
    %c0_48 = arith.constant 0 : index
    %c28 = arith.constant 28 : index
    %c0_49 = arith.constant 0 : index
    %62 = vector.load %arg5[%c0_48, %c28, %c0_49] : memref<2x36x256xf32, #tpu.memory_space<vmem>>, vector<2x4x256xf32>
    tpu.vector_store %arg5[%c0_48, %c28, %c0_49], %61 {strides = array<i32>} : memref<2x36x256xf32, #tpu.memory_space<vmem>>, vector<2x4x256xf32>,
    %c0_50 = arith.constant 0 : index
    %c0_51 = arith.constant 0 : index
    %c145 = arith.constant 145 : index
    %63 = vector.load %arg4[%c0_50, %c0_51, %c145] : memref<2x4x401xf32, #tpu.memory_space<vmem>>, vector<2x4x256xf32>
    %cst_52 = arith.constant 0.000000e+00 : f32
    %64 = vector.shape_cast %26 : vector<1x1x256xi1> to vector<1x1x256xi1>
    %65 = vector.broadcast %64 : vector<1x1x256xi1> to vector<2x4x256xi1>
    %66 = vector.broadcast %cst_52 : f32 to vector<2x4x256xf32>
    %67 = arith.select %65, %63, %66 : vector<2x4x256xi1>, vector<2x4x256xf32>
    %c0_53 = arith.constant 0 : index
    %c32 = arith.constant 32 : index
    %c0_54 = arith.constant 0 : index
    %68 = vector.load %arg5[%c0_53, %c32, %c0_54] : memref<2x36x256xf32, #tpu.memory_space<vmem>>, vector<2x4x256xf32>
    tpu.vector_store %arg5[%c0_53, %c32, %c0_54], %67 {strides = array<i32>} : memref<2x36x256xf32, #tpu.memory_space<vmem>>, vector<2x4x256xf32>,
    %c0_55 = arith.constant 0 : index
    %c0_56 = arith.constant 0 : index
    %69 = vector.load %arg1[%c0_55, %c0_56] : memref<8x36xf32, #tpu.memory_space<vmem>>, vector<8x36xf32>
    %c0_57 = arith.constant 0 : index
    %c0_58 = arith.constant 0 : index
    %70 = vector.load %arg2[%c0_57, %c0_58] : memref<8x1xf32, #tpu.memory_space<vmem>>, vector<8x1xf32>
    %c0_59 = arith.constant 0 : index
    %c0_60 = arith.constant 0 : index
    %c0_61 = arith.constant 0 : index
    %71 = vector.load %arg5[%c0_59, %c0_60, %c0_61] : memref<2x36x256xf32, #tpu.memory_space<vmem>>, vector<1x36x256xf32>
    %72 = vector.shape_cast %71 : vector<1x36x256xf32> to vector<36x256xf32>
    %cst_62 = arith.constant dense<0.000000e+00> : vector<8x256xf32>
    %73 = tpu.matmul %69, %72, %cst_62 {dimension_numbers = #tpu.dot_dimension_numbers<[1], [0], [0], [1], [0, 0, 1, 1], [], []>} : vector<8x36xf32>, vector<36x256xf32>, vector<8x256xf32> -> vector<8x256xf32>
    %74 = vector.broadcast %70 : vector<8x1xf32> to vector<8x256xf32>
    %75 = arith.addf %73, %74 : vector<8x256xf32>
    %cst_63 = arith.constant 0.000000e+00 : f32
    %76 = vector.broadcast %cst_63 : f32 to vector<8x256xf32>
    %77 = arith.maximumf %75, %76 : vector<8x256xf32>
    %c0_64 = arith.constant 0 : index
    %c0_65 = arith.constant 0 : index
    %c0_66 = arith.constant 0 : index
    %78 = vector.load %arg3[%c0_64, %c0_65, %c0_66] : memref<2x8x256xf32, #tpu.memory_space<vmem>>, vector<1x8x256xf32>
    %79 = vector.shape_cast %78 : vector<1x8x256xf32> to vector<8x256xf32>
    %80 = vector.shape_cast %77 : vector<8x256xf32> to vector<1x8x256xf32>
    tpu.vector_store %arg3[%c0_64, %c0_65, %c0_66], %80 {strides = array<i32>} : memref<2x8x256xf32, #tpu.memory_space<vmem>>, vector<1x8x256xf32>,
    %c1 = arith.constant 1 : index
    %c0_67 = arith.constant 0 : index
    %c0_68 = arith.constant 0 : index
    %81 = vector.load %arg5[%c1, %c0_67, %c0_68] : memref<2x36x256xf32, #tpu.memory_space<vmem>>, vector<1x36x256xf32>
    %82 = vector.shape_cast %81 : vector<1x36x256xf32> to vector<36x256xf32>
    %cst_69 = arith.constant dense<0.000000e+00> : vector<8x256xf32>
    %83 = tpu.matmul %69, %82, %cst_69 {dimension_numbers = #tpu.dot_dimension_numbers<[1], [0], [0], [1], [0, 0, 1, 1], [], []>} : vector<8x36xf32>, vector<36x256xf32>, vector<8x256xf32> -> vector<8x256xf32>
    %84 = vector.broadcast %70 : vector<8x1xf32> to vector<8x256xf32>
    %85 = arith.addf %83, %84 : vector<8x256xf32>
    %cst_70 = arith.constant 0.000000e+00 : f32
    %86 = vector.broadcast %cst_70 : f32 to vector<8x256xf32>
    %87 = arith.maximumf %85, %86 : vector<8x256xf32>
    %c1_71 = arith.constant 1 : index
    %c0_72 = arith.constant 0 : index
    %c0_73 = arith.constant 0 : index
    %88 = vector.load %arg3[%c1_71, %c0_72, %c0_73] : memref<2x8x256xf32, #tpu.memory_space<vmem>>, vector<1x8x256xf32>
    %89 = vector.shape_cast %88 : vector<1x8x256xf32> to vector<8x256xf32>
    %90 = vector.shape_cast %87 : vector<8x256xf32> to vector<1x8x256xf32>
    tpu.vector_store %arg3[%c1_71, %c0_72, %c0_73], %90 {strides = array<i32>} : memref<2x8x256xf32, #tpu.memory_space<vmem>>, vector<1x8x256xf32>,
    return
  }
}

</mosaic_0001>

<llo_original>
// kernel: _lambda_.1
$region0: #{_lambda_.1}
  #allocation0 [shape = 'u32[]', space=smem, size = 0x4, offset = 0x4, fixed_abs, tag = 'smem constant byte address 0x4 - core index']
  #allocation1 [shape = 'u32[144,128]{1,0:T(1,128)}', space=vmem, size = 0x12000, scoped, tag = 'internal scratch']
  #allocation2 [shape = 'f32[2,4,401]{2,1,0:T(4,128)}', space=vmem, size = 0x4000, scoped, tag = 'scratch operand']
  #allocation3 [shape = 'f32[2,36,256]{2,1,0:T(8,128)}', space=vmem, size = 0x14000, scoped, tag = 'scratch operand']
  %s0 = inlined_call_operand.vmem [shape: f32[2,4,256], index: 0, kind: input, shape index: {}]
  %s1 = inlined_call_operand.vmem [shape: f32[8,36], index: 1, kind: input, shape index: {}]
  %s2 = inlined_call_operand.vmem [shape: f32[8,1], index: 2, kind: input, shape index: {}]
  %s3 = inlined_call_operand.vmem [shape: f32[2,8,256], index: 3, kind: output, shape index: {}]
  %s4 = sld [smem:[#allocation0]]
  $region22: #{_lambda_.1} parent=0
    _
  %s6 = ssub.s32 1, %s4
  %s7 = scalar_select 0, %s6, %s4
  // Predicated region
  $region2: #{_lambda_.1} parent=0 // pred_check
    _
  $region3: #{_lambda_.1} parent=0 // pred_check_branch
    %9 = sbr.rel (0) target = $region5
  $region4: #{_lambda_.1} parent=0 // pred_region
    _
  $region5: #{_lambda_.1} parent=0 // pred_fallthru
    _
  // Predicated region
  $region6: #{_lambda_.1} parent=0 // pred_check
    _
  $region7: #{_lambda_.1} parent=0 // pred_check_branch
    %11 = sbr.rel (0) target = $region9
  $region8: #{_lambda_.1} parent=0 // pred_region
    _
  $region9: #{_lambda_.1} parent=0 // pred_fallthru
    _
  // Predicated region
  $region10: #{_lambda_.1} parent=0 // pred_check
    _
  $region11: #{_lambda_.1} parent=0 // pred_check_branch
    %13 = sbr.rel (0) target = $region13
  $region12: #{_lambda_.1} parent=0 // pred_region
    _
  $region13: #{_lambda_.1} parent=0 // pred_fallthru
    _
  %14 = vst [vmem:[#allocation2] sm:$0xff] 0.0
  %vm15 = vcmask 1043456
  %vm16 = vcmask 138244
  %vm17 = vmor %vm16, %vm15
  %18 = vst.msk [vmem:[#allocation2 + $0x8] sm:$0xff] %vm17, 0.0
  %19 = vst [vmem:[#allocation2 + $0x10] sm:$0xff] 0.0
  %20 = vst.msk [vmem:[#allocation2 + $0x18] sm:$0xff] %vm17, 0.0
  %v21 = vld [vmem:[%s0] sm:$0xff]
  %v22 = vld [vmem:[%s0 + $0x8] sm:$0xff]
  %23 = vst [vmem:[#allocation2 + $0x4] sm:$0xff] %v21
  %24 = vst [vmem:[#allocation2 + $0x14] sm:$0xff] %v22
  %v25 = vlaneseq
  %v26 = vand.u32 %v25, 127
  %v27 = vadd.s32 %v26, 128
  %vm28 = vcmp.lt.s32.totalorder %v26, 0
  %v29 = vsub.s32 0, %v26
  %v30 = vsel %vm28, %v29, %v26
  %v31 = vshrl.u32 %v30, 4
  %v32 = vand.u32 %v30, 15
  %v33 = vsub.s32 0, %v32
  %v34 = vsel %vm28, %v33, %v32
  %vm35 = vcmp.lt.s32.totalorder %v27, 0
  %v36 = vsub.s32 0, %v27
  %v37 = vsel %vm35, %v36, %v27
  %v38 = vshrl.u32 %v37, 4
  %v39 = vand.u32 %v37, 15
  %v40 = vsub.s32 0, %v39
  %v41 = vsel %vm35, %v40, %v39
  %vm42 = vcmp.ne.s32.totalorder %v34, 0
  %vm43 = vcmp.ne.s32.totalorder %v41, 0
  %vm44 = vcmp.lt.s32.totalorder %v34, 0
  %vm45 = vcmp.lt.s32.totalorder %v41, 0
  %vm46 = vmand %vm44, %vm42
  %vm47 = vmand %vm45, %vm43
  %v48 = vadd.s32 %v34, 16
  %v49 = vadd.s32 %v41, 16
  %v50 = vsel %vm46, %v48, %v34
  %v51 = vsel %vm47, %v49, %v41
  %vm52 = vcmp.ge.s32.totalorder %v50, 1
  %vm53 = vcmp.ge.s32.totalorder %v51, 1
  %vm54 = vcmp.lt.s32.totalorder %v50, 15
  %vm55 = vcmp.lt.s32.totalorder %v51, 15
  %v56 = vld [vmem:[#allocation2] sm:$0xff]
  %v57 = vld [vmem:[#allocation2 + $0x8] sm:$0xf]
  %v58 = vld [vmem:[#allocation2 + $0x10] sm:$0xff]
  %v59 = vld [vmem:[#allocation2 + $0x18] sm:$0xf]
  %v60 = vsel %vm52, 1, 0
  %v61 = vsel %vm53, 1, 0
  %vm62 = vcmp.eq.s32.totalorder %v60, 1
  %vm63 = vcmp.eq.s32.totalorder %v61, 1
  %v68 = vcombine.high %v56, %v56
  %v69 = vcombine.high %v58, %v58
  %70 = vrot.lane.b32.xlu0 %v56, 17
  %v71 = vpop.permute.xlu0 %70
  %72 = vrot.lane.b32.xlu0 %v68, 17
  %v73 = vpop.permute.xlu0 %72
  %74 = vrot.lane.b32.xlu0 %v57, 17
  %v75 = vpop.permute.xlu0 %74
  %76 = vrot.lane.b32.xlu0 %v58, 17
  %v77 = vpop.permute.xlu0 %76
  %78 = vrot.lane.b32.xlu0 %v69, 17
  %v79 = vpop.permute.xlu0 %78
  %80 = vrot.lane.b32.xlu0 %v59, 17
  %v81 = vpop.permute.xlu0 %80
  %vm82 = vcmask 138240
  %v83 = vsel %vm82, %v71, %v73
  %v84 = vsel %vm82, %v73, %v75
  %v85 = vsel %vm82, %v77, %v79
  %v86 = vsel %vm82, %v79, %v81
  %v91 = vsel %vm62, %v83, 0.0
  %v92 = vsel %vm63, %v84, 0.0
  %v93 = vsel %vm62, %v85, 0.0
  %v94 = vsel %vm63, %v86, 0.0
  %95 = vst [vmem:[#allocation3] sm:$0xf] %v91
  %96 = vst [vmem:[#allocation3 + $0x8] sm:$0xf] %v92
  %97 = vst [vmem:[#allocation3 + $0x50] sm:$0xf] %v93
  %98 = vst [vmem:[#allocation3 + $0x58] sm:$0xf] %v94
  %v99 = vld [vmem:[#allocation2] sm:$0xff]
  %v100 = vld [vmem:[#allocation2 + $0x8] sm:$0xf]
  %v101 = vld [vmem:[#allocation2 + $0x10] sm:$0xff]
  %v102 = vld [vmem:[#allocation2 + $0x18] sm:$0xf]
  %v107 = vcombine.low %v99, %v99
  %v108 = vcombine.low %v100, %v100
  %v109 = vcombine.low %v101, %v101
  %v110 = vcombine.low %v102, %v102
  %111 = vrot.lane.b32.xlu0 %v107, 16
  %v112 = vpop.permute.xlu0 %111
  %113 = vrot.lane.b32.xlu0 %v99, 16
  %v114 = vpop.permute.xlu0 %113
  %115 = vrot.lane.b32.xlu0 %v108, 16
  %v116 = vpop.permute.xlu0 %115
  %117 = vrot.lane.b32.xlu0 %v109, 16
  %v118 = vpop.permute.xlu0 %117
  %119 = vrot.lane.b32.xlu0 %v101, 16
  %v120 = vpop.permute.xlu0 %119
  %121 = vrot.lane.b32.xlu0 %v110, 16
  %v122 = vpop.permute.xlu0 %121
  %vm123 = vcmask 130048
  %v124 = vsel %vm123, %v112, %v114
  %v125 = vsel %vm123, %v114, %v116
  %v126 = vsel %vm123, %v118, %v120
  %v127 = vsel %vm123, %v120, %v122
  %132 = vst [vmem:[#allocation3] sm:$0xf0] %v124
  %133 = vst [vmem:[#allocation3 + $0x8] sm:$0xf0] %v125
  %134 = vst [vmem:[#allocation3 + $0x50] sm:$0xf0] %v126
  %135 = vst [vmem:[#allocation3 + $0x58] sm:$0xf0] %v127
  %v136 = vld [vmem:[#allocation2] sm:$0xff]
  %v137 = vld [vmem:[#allocation2 + $0x8] sm:$0xf]
  %v138 = vld [vmem:[#allocation2 + $0x10] sm:$0xff]
  %v139 = vld [vmem:[#allocation2 + $0x18] sm:$0xf]
  %v140 = vsel %vm54, 1, 0
  %v141 = vsel %vm55, 1, 0
  %vm142 = vcmp.eq.s32.totalorder %v140, 1
  %vm143 = vcmp.eq.s32.totalorder %v141, 1
  %v148 = vcombine.high %v136, %v136
  %v149 = vcombine.high %v138, %v138
  %150 = vrot.lane.b32.xlu0 %v136, 15
  %v151 = vpop.permute.xlu0 %150
  %152 = vrot.lane.b32.xlu0 %v148, 15
  %v153 = vpop.permute.xlu0 %152
  %154 = vrot.lane.b32.xlu0 %v137, 15
  %v155 = vpop.permute.xlu0 %154
  %156 = vrot.lane.b32.xlu0 %v138, 15
  %v157 = vpop.permute.xlu0 %156
  %158 = vrot.lane.b32.xlu0 %v149, 15
  %v159 = vpop.permute.xlu0 %158
  %160 = vrot.lane.b32.xlu0 %v139, 15
  %v161 = vpop.permute.xlu0 %160
  %vm162 = vcmask 121856
  %v163 = vsel %vm162, %v151, %v153
  %v164 = vsel %vm162, %v153, %v155
  %v165 = vsel %vm162, %v157, %v159
  %v166 = vsel %vm162, %v159, %v161
  %v171 = vsel %vm142, %v163, 0.0
  %v172 = vsel %vm143, %v164, 0.0
  %v173 = vsel %vm142, %v165, 0.0
  %v174 = vsel %vm143, %v166, 0.0
  %175 = vst [vmem:[#allocation3 + $0x10] sm:$0xf] %v171
  %176 = vst [vmem:[#allocation3 + $0x18] sm:$0xf] %v172
  %177 = vst [vmem:[#allocation3 + $0x60] sm:$0xf] %v173
  %178 = vst [vmem:[#allocation3 + $0x68] sm:$0xf] %v174
  %v179 = vld [vmem:[#allocation2] sm:$0xff]
  %v180 = vld [vmem:[#allocation2 + $0x8] sm:$0xf]
  %v181 = vld [vmem:[#allocation2 + $0x10] sm:$0xff]
  %v182 = vld [vmem:[#allocation2 + $0x18] sm:$0xf]
  %v187 = vcombine.high %v179, %v179
  %v188 = vcombine.high %v181, %v181
  %189 = vrot.lane.b32.xlu0 %v179, 1
  %v190 = vpop.permute.xlu0 %189
  %191 = vrot.lane.b32.xlu0 %v187, 1
  %v192 = vpop.permute.xlu0 %191
  %193 = vrot.lane.b32.xlu0 %v180, 1
  %v194 = vpop.permute.xlu0 %193
  %195 = vrot.lane.b32.xlu0 %v181, 1
  %v196 = vpop.permute.xlu0 %195
  %197 = vrot.lane.b32.xlu0 %v188, 1
  %v198 = vpop.permute.xlu0 %197
  %199 = vrot.lane.b32.xlu0 %v182, 1
  %v200 = vpop.permute.xlu0 %199
  %vm201 = vcmask 7168
  %v202 = vsel %vm201, %v190, %v192
  %v203 = vsel %vm201, %v192, %v194
  %v204 = vsel %vm201, %v196, %v198
  %v205 = vsel %vm201, %v198, %v200
  %v210 = vsel %vm62, %v202, 0.0
  %v211 = vsel %vm63, %v203, 0.0
  %v212 = vsel %vm62, %v204, 0.0
  %v213 = vsel %vm63, %v205, 0.0
  %v218 = vrot.slane %v210, 4
  %v219 = vrot.slane %v211, 4
  %v220 = vrot.slane %v212, 4
  %v221 = vrot.slane %v213, 4
  %226 = vst [vmem:[#allocation3 + $0x10] sm:$0xf0] %v218
  %227 = vst [vmem:[#allocation3 + $0x18] sm:$0xf0] %v219
  %228 = vst [vmem:[#allocation3 + $0x60] sm:$0xf0] %v220
  %229 = vst [vmem:[#allocation3 + $0x68] sm:$0xf0] %v221
  %v230 = vld [vmem:[#allocation2 + $0x4] sm:$0xff]
  %v231 = vld [vmem:[#allocation2 + $0x14] sm:$0xff]
  %v234 = vcombine.high %v230, %v230
  %v235 = vcombine.high %v231, %v231
  %238 = vst [vmem:[#allocation3 + $0x20] sm:$0xf] %v230
  %239 = vst [vmem:[#allocation3 + $0x28] sm:$0xf] %v234
  %240 = vst [vmem:[#allocation3 + $0x70] sm:$0xf] %v231
  %241 = vst [vmem:[#allocation3 + $0x78] sm:$0xf] %v235
  %v242 = vld [vmem:[#allocation2 + $0x4] sm:$0xff]
  %v243 = vld [vmem:[#allocation2 + $0xc] sm:$0xf]
  %v244 = vld [vmem:[#allocation2 + $0x14] sm:$0xff]
  %v245 = vld [vmem:[#allocation2 + $0x1c] sm:$0xf]
  %v250 = vcombine.high %v242, %v242
  %v251 = vcombine.high %v244, %v244
  %252 = vrot.lane.b32.xlu0 %v242, 127
  %v253 = vpop.permute.xlu0 %252
  %254 = vrot.lane.b32.xlu0 %v250, 127
  %v255 = vpop.permute.xlu0 %254
  %256 = vrot.lane.b32.xlu0 %v243, 127
  %v257 = vpop.permute.xlu0 %256
  %258 = vrot.lane.b32.xlu0 %v244, 127
  %v259 = vpop.permute.xlu0 %258
  %260 = vrot.lane.b32.xlu0 %v251, 127
  %v261 = vpop.permute.xlu0 %260
  %262 = vrot.lane.b32.xlu0 %v245, 127
  %v263 = vpop.permute.xlu0 %262
  %vm264 = vcmask 1039360
  %v265 = vsel %vm264, %v253, %v255
  %v266 = vsel %vm264, %v255, %v257
  %v267 = vsel %vm264, %v259, %v261
  %v268 = vsel %vm264, %v261, %v263
  %v273 = vsel %vm142, %v265, 0.0
  %v274 = vsel %vm143, %v266, 0.0
  %v275 = vsel %vm142, %v267, 0.0
  %v276 = vsel %vm143, %v268, 0.0
  %v281 = vrot.slane %v273, 4
  %v282 = vrot.slane %v274, 4
  %v283 = vrot.slane %v275, 4
  %v284 = vrot.slane %v276, 4
  %289 = vst [vmem:[#allocation3 + $0x20] sm:$0xf0] %v281
  %290 = vst [vmem:[#allocation3 + $0x28] sm:$0xf0] %v282
  %291 = vst [vmem:[#allocation3 + $0x70] sm:$0xf0] %v283
  %292 = vst [vmem:[#allocation3 + $0x78] sm:$0xf0] %v284
  %v293 = vld [vmem:[#allocation2 + $0x4] sm:$0xff]
  %v294 = vld [vmem:[#allocation2 + $0xc] sm:$0xf]
  %v295 = vld [vmem:[#allocation2 + $0x14] sm:$0xff]
  %v296 = vld [vmem:[#allocation2 + $0x1c] sm:$0xf]
  %v301 = vcombine.high %v293, %v293
  %v302 = vcombine.high %v295, %v295
  %303 = vrot.lane.b32.xlu0 %v293, 113
  %v304 = vpop.permute.xlu0 %303
  %305 = vrot.lane.b32.xlu0 %v301, 113
  %v306 = vpop.permute.xlu0 %305
  %307 = vrot.lane.b32.xlu0 %v294, 113
  %v308 = vpop.permute.xlu0 %307
  %309 = vrot.lane.b32.xlu0 %v295, 113
  %v310 = vpop.permute.xlu0 %309
  %311 = vrot.lane.b32.xlu0 %v302, 113
  %v312 = vpop.permute.xlu0 %311
  %313 = vrot.lane.b32.xlu0 %v296, 113
  %v314 = vpop.permute.xlu0 %313
  %vm315 = vcmask 924672
  %v316 = vsel %vm315, %v304, %v306
  %v317 = vsel %vm315, %v306, %v308
  %v318 = vsel %vm315, %v310, %v312
  %v319 = vsel %vm315, %v312, %v314
  %v324 = vsel %vm62, %v316, 0.0
  %v325 = vsel %vm63, %v317, 0.0
  %v326 = vsel %vm62, %v318, 0.0
  %v327 = vsel %vm63, %v319, 0.0
  %328 = vst [vmem:[#allocation3 + $0x30] sm:$0xf] %v324
  %329 = vst [vmem:[#allocation3 + $0x38] sm:$0xf] %v325
  %330 = vst [vmem:[#allocation3 + $0x80] sm:$0xf] %v326
  %331 = vst [vmem:[#allocation3 + $0x88] sm:$0xf] %v327
  %v332 = vld [vmem:[#allocation2 + $0x4] sm:$0xff]
  %v333 = vld [vmem:[#allocation2 + $0xc] sm:$0xf]
  %v334 = vld [vmem:[#allocation2 + $0x14] sm:$0xff]
  %v335 = vld [vmem:[#allocation2 + $0x1c] sm:$0xf]
  %v340 = vcombine.low %v332, %v332
  %v341 = vcombine.low %v333, %v333
  %v342 = vcombine.low %v334, %v334
  %v343 = vcombine.low %v335, %v335
  %344 = vrot.lane.b32.xlu0 %v340, 112
  %v345 = vpop.permute.xlu0 %344
  %346 = vrot.lane.b32.xlu0 %v332, 112
  %v347 = vpop.permute.xlu0 %346
  %348 = vrot.lane.b32.xlu0 %v341, 112
  %v349 = vpop.permute.xlu0 %348
  %350 = vrot.lane.b32.xlu0 %v342, 112
  %v351 = vpop.permute.xlu0 %350
  %352 = vrot.lane.b32.xlu0 %v334, 112
  %v353 = vpop.permute.xlu0 %352
  %354 = vrot.lane.b32.xlu0 %v343, 112
  %v355 = vpop.permute.xlu0 %354
  %vm356 = vcmask 916480
  %v357 = vsel %vm356, %v345, %v347
  %v358 = vsel %vm356, %v347, %v349
  %v359 = vsel %vm356, %v351, %v353
  %v360 = vsel %vm356, %v353, %v355
  %365 = vst [vmem:[#allocation3 + $0x30] sm:$0xf0] %v357
  %366 = vst [vmem:[#allocation3 + $0x38] sm:$0xf0] %v358
  %367 = vst [vmem:[#allocation3 + $0x80] sm:$0xf0] %v359
  %368 = vst [vmem:[#allocation3 + $0x88] sm:$0xf0] %v360
  %v369 = vld [vmem:[#allocation2 + $0x4] sm:$0xff]
  %v370 = vld [vmem:[#allocation2 + $0xc] sm:$0xf]
  %v371 = vld [vmem:[#allocation2 + $0x14] sm:$0xff]
  %v372 = vld [vmem:[#allocation2 + $0x1c] sm:$0xf]
  %v377 = vcombine.high %v369, %v369
  %v378 = vcombine.high %v371, %v371
  %379 = vrot.lane.b32.xlu0 %v369, 111
  %v380 = vpop.permute.xlu0 %379
  %381 = vrot.lane.b32.xlu0 %v377, 111
  %v382 = vpop.permute.xlu0 %381
  %383 = vrot.lane.b32.xlu0 %v370, 111
  %v384 = vpop.permute.xlu0 %383
  %385 = vrot.lane.b32.xlu0 %v371, 111
  %v386 = vpop.permute.xlu0 %385
  %387 = vrot.lane.b32.xlu0 %v378, 111
  %v388 = vpop.permute.xlu0 %387
  %389 = vrot.lane.b32.xlu0 %v372, 111
  %v390 = vpop.permute.xlu0 %389
  %vm391 = vcmask 908288
  %v392 = vsel %vm391, %v380, %v382
  %v393 = vsel %vm391, %v382, %v384
  %v394 = vsel %vm391, %v386, %v388
  %v395 = vsel %vm391, %v388, %v390
  %v400 = vsel %vm142, %v392, 0.0
  %v401 = vsel %vm143, %v393, 0.0
  %v402 = vsel %vm142, %v394, 0.0
  %v403 = vsel %vm143, %v395, 0.0
  %404 = vst [vmem:[#allocation3 + $0x40] sm:$0xf] %v400
  %405 = vst [vmem:[#allocation3 + $0x48] sm:$0xf] %v401
  %406 = vst [vmem:[#allocation3 + $0x90] sm:$0xf] %v402
  %407 = vst [vmem:[#allocation3 + $0x98] sm:$0xf] %v403
  %v408 = vld [vmem:[%s1] sm:$0xff]
  %v409 = vld [vmem:[%s2] sm:$0xff]
  %v410 = vld [vmem:[#allocation3] sm:$0xff]
  %v411 = vld [vmem:[#allocation3 + $0x8] sm:$0xff]
  %v412 = vld [vmem:[#allocation3 + $0x10] sm:$0xff]
  %v413 = vld [vmem:[#allocation3 + $0x18] sm:$0xff]
  %v414 = vld [vmem:[#allocation3 + $0x20] sm:$0xff]
  %v415 = vld [vmem:[#allocation3 + $0x28] sm:$0xff]
  %v416 = vld [vmem:[#allocation3 + $0x30] sm:$0xff]
  %v417 = vld [vmem:[#allocation3 + $0x38] sm:$0xff]
  %v418 = vld [vmem:[#allocation3 + $0x40] sm:$0xf]
  %v419 = vld [vmem:[#allocation3 + $0x48] sm:$0xf]
  %421 = vset.pattern.permute.xlu0 0
  %422 = vperm.xlu0 %421, %v409
  %v423 = vpop.permute.xlu0 %422
  %vm425 = vcmask 293888
  %v427 = vsel %vm425, %v408, 0
  %v430 = vsel %vm15, %v418, 0
  %v433 = vsel %vm15, %v419, 0
  %435 = vmatprep.subr.mxu0 %v411
  %436 = vmatpush1.msra.mxu0 %v410
  %437 = vmatprep.subr.mxu0 %v413
  %438 = vmatpush1.msra.mxu0 %v412
  %439 = vmatprep.subr.mxu0 %v415
  %440 = vmatpush1.msra.mxu0 %v414
  %441 = vmatprep.subr.mxu0 %v417
  %442 = vmatpush1.msra.mxu0 %v416
  %443 = vmatprep.subr.mxu0 %v433
  %444 = vmatpush1.msra.mxu0 %v430
  %445 = vmatprep.subr.mxu0 0.0
  %446 = vmatpush1.msra.mxu0 0.0
  %447 = vmatprep.subr.mxu0 0.0
  %448 = vmatpush1.msra.mxu0 0.0
  %449 = vmatprep.subr.mxu0 0.0
  %450 = vmatpush1.msra.mxu0 0.0
  %451 = vmatprep.subr.mxu0 0.0
  %452 = vmatpush1.msra.mxu0 0.0
  %453 = vmatprep.subr.mxu0 0.0
  %454 = vmatpush1.msra.mxu0 0.0
  %455 = vmatprep.subr.mxu0 0.0
  %456 = vmatpush1.msra.mxu0 0.0
  %457 = vmatprep.subr.mxu0 0.0
  %458 = vmatpush1.msra.mxu0 0.0
  %459 = vmatprep.subr.mxu0 0.0
  %460 = vmatpush1.msra.mxu0 0.0
  %461 = vmatprep.subr.mxu0 0.0
  %462 = vmatpush1.msra.mxu0 0.0
  %463 = vmatprep.subr.mxu0 0.0
  %464 = vmatpush1.msra.mxu0 0.0
  %465 = vmatprep.subr.mxu0 0.0
  %466 = vmatpush1.msra.mxu0 0.0
  %467 = vmatprep.subr.mxu0 0.0
  %468 = vmatpush1.msra.mxu0 0.0
  %469 = vmatprep.subr.mxu0 0.0
  %470 = vmatpush1.msra.mxu0 0.0
  %471 = vmatprep.subr.mxu0 0.0
  %472 = vmatpush1.msra.mxu0 0.0
  %473 = vmatprep.subr.mxu0 0.0
  %474 = vmatpush1.msra.mxu0 0.0
  %475 = vmatprep.subr.mxu0 0.0
  %476 = vmatpush1.msra.mxu0 0.0
  %477 = vmatprep.subr.mxu0 0.0
  %478 = vmatpush1.msra.mxu0 0.0
  %479 = vmatprep.subr.mxu0 0.0
  %480 = vmatpush1.msra.mxu0 0.0
  %481 = vmatprep.subr.mxu0 0.0
  %482 = vmatpush1.msra.mxu0 0.0
  %483 = vmatprep.subr.mxu0 0.0
  %484 = vmatpush1.msra.mxu0 0.0
  %485 = vmatprep.subr.mxu0 0.0
  %486 = vmatpush1.msra.mxu0 0.0
  %487 = vmatprep.subr.mxu0 0.0
  %488 = vmatpush1.msra.mxu0 0.0
  %489 = vmatprep.subr.mxu0 0.0
  %490 = vmatpush1.msra.mxu0 0.0
  %491 = vmatprep.subr.mxu0 0.0
  %492 = vmatpush1.msra.mxu0 0.0
  %493 = vmatprep.subr.mxu0 0.0
  %494 = vmatpush1.msra.mxu0 0.0
  %495 = vmatprep.subr.mxu0 0.0
  %496 = vmatpush1.msra.mxu0 0.0
  %497 = vmatprep.subr.mxu0 0.0
  %498 = vmatpush1.msra.mxu0 0.0
  %499 = vmatprep.mubr.f32.mxu0 0.0
  %500 = vmatmul.mubr.f32.gmra.mrb[0].mxu0 %v427
  %v501 = vpop.f32.mrb[0].mxu0
  %v502 = vadd.f32 %v423, %v501
  %v503 = vpop.f32.mrb[0].mxu0
  %v504 = vadd.f32 %v423, %v503
  %505 = vdwg.mxu0
  %v506 = vmax.f32 %v502, 0.0
  %v507 = vmax.f32 %v504, 0.0
  %508 = vst [vmem:[%s3] sm:$0xff] %v506
  %509 = vst [vmem:[%s3 + $0x8] sm:$0xff] %v507
  %s510 = scalar_lea.vmem [#allocation3], 80
  %v511 = vld [vmem:[%s510] sm:$0xff]
  %v512 = vld [vmem:[%s510 + $0x8] sm:$0xff]
  %v513 = vld [vmem:[%s510 + $0x10] sm:$0xff]
  %v514 = vld [vmem:[%s510 + $0x18] sm:$0xff]
  %v515 = vld [vmem:[%s510 + $0x20] sm:$0xff]
  %v516 = vld [vmem:[%s510 + $0x28] sm:$0xff]
  %v517 = vld [vmem:[%s510 + $0x30] sm:$0xff]
  %v518 = vld [vmem:[%s510 + $0x38] sm:$0xff]
  %v519 = vld [vmem:[%s510 + $0x40] sm:$0xf]
  %v520 = vld [vmem:[%s510 + $0x48] sm:$0xf]
  %v522 = vsel %vm15, %v519, 0
  %v525 = vsel %vm15, %v520, 0
  %527 = vmatprep.subr.mxu0 %v512
  %528 = vmatpush1.msra.mxu0 %v511
  %529 = vmatprep.subr.mxu0 %v514
  %530 = vmatpush1.msra.mxu0 %v513
  %531 = vmatprep.subr.mxu0 %v516
  %532 = vmatpush1.msra.mxu0 %v515
  %533 = vmatprep.subr.mxu0 %v518
  %534 = vmatpush1.msra.mxu0 %v517
  %535 = vmatprep.subr.mxu0 %v525
  %536 = vmatpush1.msra.mxu0 %v522
  %537 = vmatprep.subr.mxu0 0.0
  %538 = vmatpush1.msra.mxu0 0.0
  %539 = vmatprep.subr.mxu0 0.0
  %540 = vmatpush1.msra.mxu0 0.0
  %541 = vmatprep.subr.mxu0 0.0
  %542 = vmatpush1.msra.mxu0 0.0
  %543 = vmatprep.subr.mxu0 0.0
  %544 = vmatpush1.msra.mxu0 0.0
  %545 = vmatprep.subr.mxu0 0.0
  %546 = vmatpush1.msra.mxu0 0.0
  %547 = vmatprep.subr.mxu0 0.0
  %548 = vmatpush1.msra.mxu0 0.0
  %549 = vmatprep.subr.mxu0 0.0
  %550 = vmatpush1.msra.mxu0 0.0
  %551 = vmatprep.subr.mxu0 0.0
  %552 = vmatpush1.msra.mxu0 0.0
  %553 = vmatprep.subr.mxu0 0.0
  %554 = vmatpush1.msra.mxu0 0.0
  %555 = vmatprep.subr.mxu0 0.0
  %556 = vmatpush1.msra.mxu0 0.0
  %557 = vmatprep.subr.mxu0 0.0
  %558 = vmatpush1.msra.mxu0 0.0
  %559 = vmatprep.subr.mxu0 0.0
  %560 = vmatpush1.msra.mxu0 0.0
  %561 = vmatprep.subr.mxu0 0.0
  %562 = vmatpush1.msra.mxu0 0.0
  %563 = vmatprep.subr.mxu0 0.0
  %564 = vmatpush1.msra.mxu0 0.0
  %565 = vmatprep.subr.mxu0 0.0
  %566 = vmatpush1.msra.mxu0 0.0
  %567 = vmatprep.subr.mxu0 0.0
  %568 = vmatpush1.msra.mxu0 0.0
  %569 = vmatprep.subr.mxu0 0.0
  %570 = vmatpush1.msra.mxu0 0.0
  %571 = vmatprep.subr.mxu0 0.0
  %572 = vmatpush1.msra.mxu0 0.0
  %573 = vmatprep.subr.mxu0 0.0
  %574 = vmatpush1.msra.mxu0 0.0
  %575 = vmatprep.subr.mxu0 0.0
  %576 = vmatpush1.msra.mxu0 0.0
  %577 = vmatprep.subr.mxu0 0.0
  %578 = vmatpush1.msra.mxu0 0.0
  %579 = vmatprep.subr.mxu0 0.0
  %580 = vmatpush1.msra.mxu0 0.0
  %581 = vmatprep.subr.mxu0 0.0
  %582 = vmatpush1.msra.mxu0 0.0
  %583 = vmatprep.subr.mxu0 0.0
  %584 = vmatpush1.msra.mxu0 0.0
  %585 = vmatprep.subr.mxu0 0.0
  %586 = vmatpush1.msra.mxu0 0.0
  %587 = vmatprep.subr.mxu0 0.0
  %588 = vmatpush1.msra.mxu0 0.0
  %589 = vmatprep.subr.mxu0 0.0
  %590 = vmatpush1.msra.mxu0 0.0
  %591 = vmatprep.mubr.f32.mxu0 0.0
  %592 = vmatmul.mubr.f32.gmra.mrb[0].mxu0 %v427
  %v593 = vpop.f32.mrb[0].mxu0
  %v594 = vadd.f32 %v423, %v593
  %v595 = vpop.f32.mrb[0].mxu0
  %v596 = vadd.f32 %v423, %v595
  %597 = vdwg.mxu0
  %v598 = vmax.f32 %v594, 0.0
  %v599 = vmax.f32 %v596, 0.0
  %s600 = scalar_lea.vmem %s3, 16
  %601 = vst [vmem:[%s600] sm:$0xff] %v598
  %602 = vst [vmem:[%s600 + $0x8] sm:$0xff] %v599
  // Predicated region
  $region14: #{_lambda_.1} parent=0 // pred_check
    _
  $region15: #{_lambda_.1} parent=0 // pred_check_branch
    %604 = sbr.rel (0) target = $region17
  $region16: #{_lambda_.1} parent=0 // pred_region
    _
  $region17: #{_lambda_.1} parent=0 // pred_fallthru
    _
  // Predicated region
  $region18: #{_lambda_.1} parent=0 // pred_check
    _
  $region19: #{_lambda_.1} parent=0 // pred_check_branch
    %606 = sbr.rel (0) target = $region21
  $region20: #{_lambda_.1} parent=0 // pred_region
    _
  $region21: #{_lambda_.1} parent=0 // pred_fallthru
    _

</llo_original>
